<compile_context>
chip_gen: v7x
topology: tpu7x:2x2x1
jax: 0.10.0
libtpu: 0.0.40
codegen_flags: <defaults>
</compile_context>

<pallas_src>
import jax
import jax.numpy as jnp
from jax.experimental import pallas as pl
from jax.experimental.pallas import tpu as pltpu


def _round_up(a, b):
    return (a + b - 1) // b * b


def inference_kernel(x_ref, w0, b0, w1, b1, w2, b2, w3, b3, out_ref):
    x = x_ref[...]  # (tile_m, idim) f32

    def linear(h, w_ref, b_ref):
        w = w_ref[...]
        # Matmul inputs may be bf16 (v6e/v7x fast path); accumulate in f32.
        z = jnp.dot(h.astype(w.dtype), w, preferred_element_type=jnp.float32)
        return z + b_ref[...]  # bias add stays f32

    # Layer 0
    z = linear(x, w0, b0)
    r0 = ((z > 0.0) & jnp.isfinite(z)).astype(jnp.float32)
    x = jnp.maximum(z, 0.0)

    # Layer 1
    z = linear(x, w1, b1)
    r1 = ((z > 0.0) & jnp.isfinite(z)).astype(jnp.float32)
    x = jnp.maximum(z, 0.0)

    # Layer 2
    z = linear(x, w2, b2)
    r2 = ((z > 0.0) & jnp.isfinite(z)).astype(jnp.float32)
    x = jnp.maximum(z, 0.0)

    # Layer 3 (no ReLU; ratio is z/z -> 1 where finite nonzero, else 0)
    z = linear(x, w3, b3)
    r3 = ((z != 0.0) & jnp.isfinite(z)).astype(jnp.float32)

    # Lane-dense packed output: [y | r0 | r1 | r2 | r3]
    out_ref[...] = jnp.concatenate([z, r0, r1, r2, r3], axis=-1)


def inference_forward(x, params, *, tile_m=512, matmul_dtype=jnp.float32):
    """Runs Inference.forward(x, self.embed). Returns (y, [r0, r1, r2, r3])."""
    orig_lead = x.shape[:-1]
    idim = x.shape[-1]
    hdim = params["w0"].shape[1]
    out_w = 5 * hdim

    x2 = x.reshape(-1, idim).astype(jnp.float32)
    n_rows = x2.shape[0]

    # --- tile sizing -------------------------------------------------------
    tile_m = max(8, min(int(tile_m), _round_up(n_rows, 8)))
    tile_m = _round_up(tile_m, 8)

    w_itemsize = jnp.dtype(matmul_dtype).itemsize
    w_bytes = 0
    for k, v in params.items():
        w_bytes += v.size * (w_itemsize if k.startswith("w") else 4)

    def est_bytes(tm):
        in_b = tm * idim * 4
        out_b = tm * out_w * 4
        live = 6 * tm * hdim * 4          # z/h/ratio intermediates headroom
        return 2 * (in_b + out_b) + 2 * w_bytes + live

    # Keep the working set comfortably under v7x's 64 MiB physical VMEM.
    VMEM_BUDGET = 24 * 1024 * 1024
    while tile_m > 8 and est_bytes(tile_m) > VMEM_BUDGET:
        tile_m = _round_up(max(8, tile_m // 2), 8)

    # --- ragged N: pad rows, slice results (no divisibility assert) --------
    padded_n = _round_up(n_rows, tile_m)
    if padded_n != n_rows:
        x2 = jnp.pad(x2, ((0, padded_n - n_rows), (0, 0)))

    grid = (padded_n // tile_m,)

    # Cast weights for the MXU (bf16 on v6e/v7x); biases stay f32.
    wc = {k: (v.astype(matmul_dtype) if k.startswith("w") else v.astype(jnp.float32))
          for k, v in params.items()}

    row_in_spec = pl.BlockSpec((tile_m, idim), lambda i: (i, 0))
    # Constant-index full blocks -> DMA'd once, resident across grid steps.
    param_specs = [pl.BlockSpec(wc[k].shape, lambda i: (0, 0))
                   for k in ("w0", "b0", "w1", "b1", "w2", "b2", "w3", "b3")]
    out_spec = pl.BlockSpec((tile_m, out_w), lambda i: (i, 0))

    vmem_limit = int(min(max(2 * est_bytes(tile_m), 32 * 1024 * 1024),
                         64 * 1024 * 1024))

    packed = pl.pallas_call(
        inference_kernel,
        grid=grid,
        in_specs=[row_in_spec] + param_specs,
        out_specs=out_spec,
        out_shape=jax.ShapeDtypeStruct((padded_n, out_w), jnp.float32),
        compiler_params=pltpu.CompilerParams(
            dimension_semantics=("parallel",),
            vmem_limit_bytes=vmem_limit),
    )(x2,
      wc["w0"], wc["b0"], wc["w1"], wc["b1"],
      wc["w2"], wc["b2"], wc["w3"], wc["b3"])

    packed = packed[:n_rows]
    new_shape = orig_lead + (hdim,)
    y = packed[:, :hdim].reshape(new_shape)
    ratios = [packed[:, (i + 1) * hdim:(i + 2) * hdim].reshape(new_shape)
              for i in range(4)]
    return y, ratios


def reference_forward(x, params):
    """Pure-JAX re-implementation of the PyTorch forward for verification."""
    def safe(a, b):
        r = a / b
        return jnp.where(jnp.isnan(r) | jnp.isinf(r), 0.0, r)

    ratios = []
    h = x
    z = h @ params["w0"] + params["b0"][0]
    h = jnp.maximum(z, 0.0)
    ratios.append(safe(h, z))
    z = h @ params["w1"] + params["b1"][0]
    h = jnp.maximum(z, 0.0)
    ratios.append(safe(h, z))
    z = h @ params["w2"] + params["b2"][0]
    h = jnp.maximum(z, 0.0)
    ratios.append(safe(h, z))
    z = h @ params["w3"] + params["b3"][0]
    ratios.append(safe(z, z))
    return z, ratios


def init_params(key, idim, hdim):
    """Deterministic synthetic init of the `embed` ModuleList Linears (bias=True)."""
    ks = jax.random.split(key, 8)

    def lin(kw, kb, fan_in, fan_out):
        bound = 1.0 / jnp.sqrt(fan_in)
        w = jax.random.uniform(kw, (fan_in, fan_out), jnp.float32, -bound, bound)
        b = jax.random.uniform(kb, (1, fan_out), jnp.float32, -bound, bound)
        return w, b

    w0, b0 = lin(ks[0], ks[1], idim, hdim)
    w1, b1 = lin(ks[2], ks[3], hdim, hdim)
    w2, b2 = lin(ks[4], ks[5], hdim, hdim)
    w3, b3 = lin(ks[6], ks[7], hdim, hdim)
    return {"w0": w0, "b0": b0, "w1": w1, "b1": b1,
            "w2": w2, "b2": b2, "w3": w3, "b3": b3}


if __name__ == "__main__":
    # Small config consistent with the module: idim=16, hdim=32 (odim/tnum
    # unused on the embed forward path), bias=True, x of shape (B, T, idim).
    B, T, idim, hdim = 2, 8, 16, 32

    key = jax.random.PRNGKey(0)
    kx, kp = jax.random.split(key)
    x = jax.random.normal(kx, (B, T, idim), dtype=jnp.float32)
    params = init_params(kp, idim, hdim)

    # ---- f32 path: strict check against PyTorch-semantics reference -------
    y, ratios = inference_forward(x, params)
    y = jax.block_until_ready(y)
    ratios = [jax.block_until_ready(r) for r in ratios]
    y_ref, ratios_ref = reference_forward(x, params)
    assert jnp.allclose(y, y_ref, atol=1e-5, rtol=1e-5)
    for r, r_ref in zip(ratios, ratios_ref):
        assert jnp.allclose(r, r_ref, atol=1e-5, rtol=1e-5)

    # ---- ragged row count: exercises the pad-and-slice tail path ----------
    x_rag = x[:, :5, :]  # N = 10 rows (not a multiple of 8)
    y2, ratios2 = inference_forward(x_rag, params)
    y2 = jax.block_until_ready(y2)
    y2_ref, ratios2_ref = reference_forward(x_rag, params)
    assert jnp.allclose(y2, y2_ref, atol=1e-5, rtol=1e-5)
    for r, r_ref in zip(ratios2, ratios2_ref):
        assert jnp.allclose(r, r_ref, atol=1e-5, rtol=1e-5)

    # ---- bf16-weight MXU path (v6e/v7x); loose numeric check on y only ----
    y3, _ = inference_forward(x, params, matmul_dtype=jnp.bfloat16)
    y3 = jax.block_until_ready(y3)
    assert float(jnp.max(jnp.abs(y3 - y_ref))) < 0.1

    print("KERNEL_OK")
</pallas_src>

<mosaic_0001>
module attributes {stable_mosaic.version = 11 : i64} {
  func.func @inference_kernel(%arg0: i32, %arg1: memref<16x16xf32, #tpu.memory_space<vmem>>, %arg2: memref<16x32xf32, #tpu.memory_space<vmem>>, %arg3: memref<1x32xf32, #tpu.memory_space<vmem>>, %arg4: memref<32x32xf32, #tpu.memory_space<vmem>>, %arg5: memref<1x32xf32, #tpu.memory_space<vmem>>, %arg6: memref<32x32xf32, #tpu.memory_space<vmem>>, %arg7: memref<1x32xf32, #tpu.memory_space<vmem>>, %arg8: memref<32x32xf32, #tpu.memory_space<vmem>>, %arg9: memref<1x32xf32, #tpu.memory_space<vmem>>, %arg10: memref<16x160xf32, #tpu.memory_space<vmem>>) attributes {dimension_semantics = [#tpu.dimension_semantics<parallel>], iteration_bounds = array<i64: 1>, scalar_prefetch = 0 : i64, scratch_operands = 0 : i64, tpu.core_type = #tpu.core_type<tc>, window_params = [{transform_indices = @transform_0, window_bounds = array<i64: 16, 16>}, {pipeline_mode = #tpu.pipeline_mode<synchronous>, transform_indices = @transform_1, window_bounds = array<i64: 16, 32>}, {pipeline_mode = #tpu.pipeline_mode<synchronous>, transform_indices = @transform_2, window_bounds = array<i64: 1, 32>}, {pipeline_mode = #tpu.pipeline_mode<synchronous>, transform_indices = @transform_3, window_bounds = array<i64: 32, 32>}, {pipeline_mode = #tpu.pipeline_mode<synchronous>, transform_indices = @transform_4, window_bounds = array<i64: 1, 32>}, {pipeline_mode = #tpu.pipeline_mode<synchronous>, transform_indices = @transform_5, window_bounds = array<i64: 32, 32>}, {pipeline_mode = #tpu.pipeline_mode<synchronous>, transform_indices = @transform_6, window_bounds = array<i64: 1, 32>}, {pipeline_mode = #tpu.pipeline_mode<synchronous>, transform_indices = @transform_7, window_bounds = array<i64: 32, 32>}, {pipeline_mode = #tpu.pipeline_mode<synchronous>, transform_indices = @transform_8, window_bounds = array<i64: 1, 32>}, {transform_indices = @transform_9, window_bounds = array<i64: 16, 160>}]} {
    %c0 = arith.constant 0 : index
    %c0_0 = arith.constant 0 : index
    %0 = vector.load %arg1[%c0, %c0_0] : memref<16x16xf32, #tpu.memory_space<vmem>>, vector<16x16xf32>
    %c0_1 = arith.constant 0 : index
    %c0_2 = arith.constant 0 : index
    %1 = vector.load %arg2[%c0_1, %c0_2] : memref<16x32xf32, #tpu.memory_space<vmem>>, vector<16x32xf32>
    %cst = arith.constant dense<0.000000e+00> : vector<16x32xf32>
    %2 = tpu.matmul %0, %1, %cst {dimension_numbers = #tpu.dot_dimension_numbers<[1], [0], [0], [1], [0, 0, 1, 1], [], []>} : vector<16x16xf32>, vector<16x32xf32>, vector<16x32xf32> -> vector<16x32xf32>
    %c0_3 = arith.constant 0 : index
    %c0_4 = arith.constant 0 : index
    %3 = vector.load %arg3[%c0_3, %c0_4] : memref<1x32xf32, #tpu.memory_space<vmem>>, vector<1x32xf32>
    %4 = vector.broadcast %3 : vector<1x32xf32> to vector<16x32xf32>
    %5 = arith.addf %2, %4 : vector<16x32xf32>
    %cst_5 = arith.constant 0.000000e+00 : f32
    %6 = vector.broadcast %cst_5 : f32 to vector<16x32xf32>
    %7 = arith.cmpf ogt, %5, %6 : vector<16x32xf32>
    %8 = tpu.weird %5 : vector<16x32xf32> -> vector<16x32xi1>
    %cst_6 = arith.constant dense<true> : vector<16x32xi1>
    %9 = arith.xori %8, %cst_6 : vector<16x32xi1>
    %10 = arith.andi %7, %9 : vector<16x32xi1>
    %11 = arith.extui %10 : vector<16x32xi1> to vector<16x32xi32>
    %12 = arith.sitofp %11 : vector<16x32xi32> to vector<16x32xf32>
    %cst_7 = arith.constant 0.000000e+00 : f32
    %13 = vector.broadcast %cst_7 : f32 to vector<16x32xf32>
    %14 = arith.maximumf %5, %13 : vector<16x32xf32>
    %c0_8 = arith.constant 0 : index
    %c0_9 = arith.constant 0 : index
    %15 = vector.load %arg4[%c0_8, %c0_9] : memref<32x32xf32, #tpu.memory_space<vmem>>, vector<32x32xf32>
    %cst_10 = arith.constant dense<0.000000e+00> : vector<16x32xf32>
    %16 = tpu.matmul %14, %15, %cst_10 {dimension_numbers = #tpu.dot_dimension_numbers<[1], [0], [0], [1], [0, 0, 1, 1], [], []>} : vector<16x32xf32>, vector<32x32xf32>, vector<16x32xf32> -> vector<16x32xf32>
    %c0_11 = arith.constant 0 : index
    %c0_12 = arith.constant 0 : index
    %17 = vector.load %arg5[%c0_11, %c0_12] : memref<1x32xf32, #tpu.memory_space<vmem>>, vector<1x32xf32>
    %18 = vector.broadcast %17 : vector<1x32xf32> to vector<16x32xf32>
    %19 = arith.addf %16, %18 : vector<16x32xf32>
    %cst_13 = arith.constant 0.000000e+00 : f32
    %20 = vector.broadcast %cst_13 : f32 to vector<16x32xf32>
    %21 = arith.cmpf ogt, %19, %20 : vector<16x32xf32>
    %22 = tpu.weird %19 : vector<16x32xf32> -> vector<16x32xi1>
    %cst_14 = arith.constant dense<true> : vector<16x32xi1>
    %23 = arith.xori %22, %cst_14 : vector<16x32xi1>
    %24 = arith.andi %21, %23 : vector<16x32xi1>
    %25 = arith.extui %24 : vector<16x32xi1> to vector<16x32xi32>
    %26 = arith.sitofp %25 : vector<16x32xi32> to vector<16x32xf32>
    %cst_15 = arith.constant 0.000000e+00 : f32
    %27 = vector.broadcast %cst_15 : f32 to vector<16x32xf32>
    %28 = arith.maximumf %19, %27 : vector<16x32xf32>
    %c0_16 = arith.constant 0 : index
    %c0_17 = arith.constant 0 : index
    %29 = vector.load %arg6[%c0_16, %c0_17] : memref<32x32xf32, #tpu.memory_space<vmem>>, vector<32x32xf32>
    %cst_18 = arith.constant dense<0.000000e+00> : vector<16x32xf32>
    %30 = tpu.matmul %28, %29, %cst_18 {dimension_numbers = #tpu.dot_dimension_numbers<[1], [0], [0], [1], [0, 0, 1, 1], [], []>} : vector<16x32xf32>, vector<32x32xf32>, vector<16x32xf32> -> vector<16x32xf32>
    %c0_19 = arith.constant 0 : index
    %c0_20 = arith.constant 0 : index
    %31 = vector.load %arg7[%c0_19, %c0_20] : memref<1x32xf32, #tpu.memory_space<vmem>>, vector<1x32xf32>
    %32 = vector.broadcast %31 : vector<1x32xf32> to vector<16x32xf32>
    %33 = arith.addf %30, %32 : vector<16x32xf32>
    %cst_21 = arith.constant 0.000000e+00 : f32
    %34 = vector.broadcast %cst_21 : f32 to vector<16x32xf32>
    %35 = arith.cmpf ogt, %33, %34 : vector<16x32xf32>
    %36 = tpu.weird %33 : vector<16x32xf32> -> vector<16x32xi1>
    %cst_22 = arith.constant dense<true> : vector<16x32xi1>
    %37 = arith.xori %36, %cst_22 : vector<16x32xi1>
    %38 = arith.andi %35, %37 : vector<16x32xi1>
    %39 = arith.extui %38 : vector<16x32xi1> to vector<16x32xi32>
    %40 = arith.sitofp %39 : vector<16x32xi32> to vector<16x32xf32>
    %cst_23 = arith.constant 0.000000e+00 : f32
    %41 = vector.broadcast %cst_23 : f32 to vector<16x32xf32>
    %42 = arith.maximumf %33, %41 : vector<16x32xf32>
    %c0_24 = arith.constant 0 : index
    %c0_25 = arith.constant 0 : index
    %43 = vector.load %arg8[%c0_24, %c0_25] : memref<32x32xf32, #tpu.memory_space<vmem>>, vector<32x32xf32>
    %cst_26 = arith.constant dense<0.000000e+00> : vector<16x32xf32>
    %44 = tpu.matmul %42, %43, %cst_26 {dimension_numbers = #tpu.dot_dimension_numbers<[1], [0], [0], [1], [0, 0, 1, 1], [], []>} : vector<16x32xf32>, vector<32x32xf32>, vector<16x32xf32> -> vector<16x32xf32>
    %c0_27 = arith.constant 0 : index
    %c0_28 = arith.constant 0 : index
    %45 = vector.load %arg9[%c0_27, %c0_28] : memref<1x32xf32, #tpu.memory_space<vmem>>, vector<1x32xf32>
    %46 = vector.broadcast %45 : vector<1x32xf32> to vector<16x32xf32>
    %47 = arith.addf %44, %46 : vector<16x32xf32>
    %cst_29 = arith.constant 0.000000e+00 : f32
    %48 = vector.broadcast %cst_29 : f32 to vector<16x32xf32>
    %49 = arith.cmpf one, %47, %48 : vector<16x32xf32>
    %50 = tpu.weird %47 : vector<16x32xf32> -> vector<16x32xi1>
    %cst_30 = arith.constant dense<true> : vector<16x32xi1>
    %51 = arith.xori %50, %cst_30 : vector<16x32xi1>
    %52 = arith.andi %49, %51 : vector<16x32xi1>
    %53 = arith.extui %52 : vector<16x32xi1> to vector<16x32xi32>
    %54 = arith.sitofp %53 : vector<16x32xi32> to vector<16x32xf32>
    %55 = tpu.concatenate %47, %12, %26, %40, %54 in 1 : vector<16x32xf32>, vector<16x32xf32>, vector<16x32xf32>, vector<16x32xf32>, vector<16x32xf32> -> vector<16x160xf32>
    %c0_31 = arith.constant 0 : index
    %c0_32 = arith.constant 0 : index
    %56 = vector.load %arg10[%c0_31, %c0_32] : memref<16x160xf32, #tpu.memory_space<vmem>>, vector<16x160xf32>
    tpu.vector_store %arg10[%c0_31, %c0_32], %55 {strides = array<i32>} : memref<16x160xf32, #tpu.memory_space<vmem>>, vector<16x160xf32>,
    return
  }
  func.func @transform_0(%arg0: i32) -> (i32, i32) {
    %c0_i32 = arith.constant 0 : i32
    %c0_i32_0 = arith.constant 0 : i32
    return %arg0, %c0_i32 : i32, i32
  }
  func.func @transform_1(%arg0: i32) -> (i32, i32) {
    %c0_i32 = arith.constant 0 : i32
    %c0_i32_0 = arith.constant 0 : i32
    %c0_i32_1 = arith.constant 0 : i32
    return %c0_i32, %c0_i32_0 : i32, i32
  }
  func.func @transform_2(%arg0: i32) -> (i32, i32) {
    %c0_i32 = arith.constant 0 : i32
    %c0_i32_0 = arith.constant 0 : i32
    %c0_i32_1 = arith.constant 0 : i32
    return %c0_i32, %c0_i32_0 : i32, i32
  }
  func.func @transform_3(%arg0: i32) -> (i32, i32) {
    %c0_i32 = arith.constant 0 : i32
    %c0_i32_0 = arith.constant 0 : i32
    %c0_i32_1 = arith.constant 0 : i32
    return %c0_i32, %c0_i32_0 : i32, i32
  }
  func.func @transform_4(%arg0: i32) -> (i32, i32) {
    %c0_i32 = arith.constant 0 : i32
    %c0_i32_0 = arith.constant 0 : i32
    %c0_i32_1 = arith.constant 0 : i32
    return %c0_i32, %c0_i32_0 : i32, i32
  }
  func.func @transform_5(%arg0: i32) -> (i32, i32) {
    %c0_i32 = arith.constant 0 : i32
    %c0_i32_0 = arith.constant 0 : i32
    %c0_i32_1 = arith.constant 0 : i32
    return %c0_i32, %c0_i32_0 : i32, i32
  }
  func.func @transform_6(%arg0: i32) -> (i32, i32) {
    %c0_i32 = arith.constant 0 : i32
    %c0_i32_0 = arith.constant 0 : i32
    %c0_i32_1 = arith.constant 0 : i32
    return %c0_i32, %c0_i32_0 : i32, i32
  }
  func.func @transform_7(%arg0: i32) -> (i32, i32) {
    %c0_i32 = arith.constant 0 : i32
    %c0_i32_0 = arith.constant 0 : i32
    %c0_i32_1 = arith.constant 0 : i32
    return %c0_i32, %c0_i32_0 : i32, i32
  }
  func.func @transform_8(%arg0: i32) -> (i32, i32) {
    %c0_i32 = arith.constant 0 : i32
    %c0_i32_0 = arith.constant 0 : i32
    %c0_i32_1 = arith.constant 0 : i32
    return %c0_i32, %c0_i32_0 : i32, i32
  }
  func.func @transform_9(%arg0: i32) -> (i32, i32) {
    %c0_i32 = arith.constant 0 : i32
    %c0_i32_0 = arith.constant 0 : i32
    return %arg0, %c0_i32 : i32, i32
  }
}

</mosaic_0001>

<llo_original>
// kernel: tpu_custom_call.1
$region0: #{tpu_custom_call.1}
  #allocation0 [shape = 'u32[]', space=smem, size = 0x4, offset = 0x4, fixed_abs, tag = 'smem constant byte address 0x4 - core index']
  #allocation1 [shape = 'u32[144,128]{1,0:T(1,128)}', space=vmem, size = 0x12000, scoped, tag = 'internal scratch']
  %s0 = inlined_call_operand.hbm [shape: f32[16,16], index: 0, kind: input, shape index: {}]
  %s1 = inlined_call_operand.hbm [shape: f32[16,32], index: 1, kind: input, shape index: {}]
  %s2 = inlined_call_operand.vmem [shape: f32[1,32], index: 2, kind: input, shape index: {}]
  %s3 = inlined_call_operand.hbm [shape: f32[32,32], index: 3, kind: input, shape index: {}]
  %s4 = inlined_call_operand.vmem [shape: f32[1,32], index: 4, kind: input, shape index: {}]
  %s5 = inlined_call_operand.hbm [shape: f32[32,32], index: 5, kind: input, shape index: {}]
  %s6 = inlined_call_operand.vmem [shape: f32[1,32], index: 6, kind: input, shape index: {}]
  %s7 = inlined_call_operand.hbm [shape: f32[32,32], index: 7, kind: input, shape index: {}]
  %s8 = inlined_call_operand.vmem [shape: f32[1,32], index: 8, kind: input, shape index: {}]
  %s9 = inlined_call_operand.hbm [shape: f32[16,160], index: 9, kind: output, shape index: {}]
  %s10 = sld [smem:[#allocation0]]
  $region66: #{tpu_custom_call.1} parent=0
    _
  %s12 = ssub.s32 1, %s10
  %s13 = scalar_select 0, %s12, %s10
  $region1: #{tpu_custom_call.1} parent=0
    #allocation2 [shape = 'u8[8192]{0}', space=vmem, size = 0x2000, scoped, tag = 'input window, operand 0, single buffered']
    #allocation3 [shape = 's32[1]{0}', space=sflag, size = 0x4, scoped, tag = 'scoped memory for tpu_custom_call.1']
    #allocation4 [shape = 's32[1]{0}', space=sflag, size = 0x4, scoped, tag = 'scoped memory for tpu_custom_call.1']
    #allocation5 [shape = 'u8[8192]{0}', space=vmem, size = 0x2000, scoped, tag = 'input window, operand 1, single buffered']
    #allocation6 [shape = 's32[1]{0}', space=sflag, size = 0x4, scoped, tag = 'scoped memory for tpu_custom_call.1']
    #allocation7 [shape = 'u8[16384]{0}', space=vmem, size = 0x4000, scoped, tag = 'input window, operand 3, single buffered']
    #allocation8 [shape = 'u8[16384]{0}', space=vmem, size = 0x4000, scoped, tag = 'input window, operand 5, single buffered']
    #allocation9 [shape = 's32[1]{0}', space=sflag, size = 0x4, scoped, tag = 'scoped memory for tpu_custom_call.1']
    #allocation10 [shape = 'u8[16384]{0}', space=vmem, size = 0x4000, scoped, tag = 'input window, operand 7, single buffered']
    #allocation11 [shape = 'u8[16384]{0}', space=vmem, size = 0x4000, scoped, tag = 'output window, operand 0, single buffered']
    %14 = vsyncpa [#allocation3], 0
    %15 = vsyncpa [#allocation6], 0
    %16 = vsyncpa [#allocation9], 0
    %17 = vsyncpa [#allocation4], 0
    // Predicated region
    $region2: #{tpu_custom_call.1} parent=1 // pred_check
      _
    $region3: #{tpu_custom_call.1} parent=1 // pred_check_branch
      %19 = sbr.rel (0) target = $region5
    $region4: #{tpu_custom_call.1} parent=1 // pred_region
      %s21 = ssub.s32 256, 256
      %22 = vsyncadd [#allocation3], %s21
      %s23 = sshll.u32 [#allocation2], 4
      %s24 = int_to_ptr.vmem [resolvable:$true] %s23
      %29 = dma.hbm_to_vmem [thread:$0]  %s0, 256, %s24, [#allocation3], 128, 128, 8
    $region5: #{tpu_custom_call.1} parent=1 // pred_fallthru
      _
    // Predicated region
    $region6: #{tpu_custom_call.1} parent=1 // pred_check
      _
    $region7: #{tpu_custom_call.1} parent=1 // pred_check_branch
      %31 = sbr.rel (0) target = $region9
    $region8: #{tpu_custom_call.1} parent=1 // pred_region
      %s33 = ssub.s32 256, 256
      %34 = vsyncadd [#allocation6], %s33
      %s35 = sshll.u32 [#allocation5], 4
      %s36 = int_to_ptr.vmem [resolvable:$true] %s35
      %41 = dma.hbm_to_vmem [thread:$0]  %s1, 256, %s36, [#allocation6], 128, 128, 8
    $region9: #{tpu_custom_call.1} parent=1 // pred_fallthru
      _
    // Predicated region
    $region10: #{tpu_custom_call.1} parent=1 // pred_check
      _
    $region11: #{tpu_custom_call.1} parent=1 // pred_check_branch
      %43 = sbr.rel (0) target = $region13
    $region12: #{tpu_custom_call.1} parent=1 // pred_region
      _
    $region13: #{tpu_custom_call.1} parent=1 // pred_fallthru
      _
    // Predicated region
    $region14: #{tpu_custom_call.1} parent=1 // pred_check
      _
    $region15: #{tpu_custom_call.1} parent=1 // pred_check_branch
      %45 = sbr.rel (0) target = $region17
    $region16: #{tpu_custom_call.1} parent=1 // pred_region
      %s47 = ssub.s32 512, 512
      %48 = vsyncadd [#allocation6], %s47
      %s49 = sshll.u32 [#allocation7], 4
      %s50 = int_to_ptr.vmem [resolvable:$true] %s49
      %55 = dma.hbm_to_vmem [thread:$0]  %s3, 512, %s50, [#allocation6], 128, 128, 8
    $region17: #{tpu_custom_call.1} parent=1 // pred_fallthru
      _
    // Predicated region
    $region18: #{tpu_custom_call.1} parent=1 // pred_check
      _
    $region19: #{tpu_custom_call.1} parent=1 // pred_check_branch
      %57 = sbr.rel (0) target = $region21
    $region20: #{tpu_custom_call.1} parent=1 // pred_region
      _
    $region21: #{tpu_custom_call.1} parent=1 // pred_fallthru
      _
    // Predicated region
    $region22: #{tpu_custom_call.1} parent=1 // pred_check
      _
    $region23: #{tpu_custom_call.1} parent=1 // pred_check_branch
      %59 = sbr.rel (0) target = $region25
    $region24: #{tpu_custom_call.1} parent=1 // pred_region
      %s61 = ssub.s32 512, 512
      %62 = vsyncadd [#allocation9], %s61
      %s63 = sshll.u32 [#allocation8], 4
      %s64 = int_to_ptr.vmem [resolvable:$true] %s63
      %69 = dma.hbm_to_vmem [thread:$0]  %s5, 512, %s64, [#allocation9], 128, 128, 8
    $region25: #{tpu_custom_call.1} parent=1 // pred_fallthru
      _
    // Predicated region
    $region26: #{tpu_custom_call.1} parent=1 // pred_check
      _
    $region27: #{tpu_custom_call.1} parent=1 // pred_check_branch
      %71 = sbr.rel (0) target = $region29
    $region28: #{tpu_custom_call.1} parent=1 // pred_region
      _
    $region29: #{tpu_custom_call.1} parent=1 // pred_fallthru
      _
    // Predicated region
    $region30: #{tpu_custom_call.1} parent=1 // pred_check
      _
    $region31: #{tpu_custom_call.1} parent=1 // pred_check_branch
      %73 = sbr.rel (0) target = $region33
    $region32: #{tpu_custom_call.1} parent=1 // pred_region
      %s75 = ssub.s32 512, 512
      %76 = vsyncadd [#allocation9], %s75
      %s77 = sshll.u32 [#allocation10], 4
      %s78 = int_to_ptr.vmem [resolvable:$true] %s77
      %83 = dma.hbm_to_vmem [thread:$0]  %s7, 512, %s78, [#allocation9], 128, 128, 8
    $region33: #{tpu_custom_call.1} parent=1 // pred_fallthru
      _
    // Predicated region
    $region34: #{tpu_custom_call.1} parent=1 // pred_check
      _
    $region35: #{tpu_custom_call.1} parent=1 // pred_check_branch
      %85 = sbr.rel (0) target = $region37
    $region36: #{tpu_custom_call.1} parent=1 // pred_region
      _
    $region37: #{tpu_custom_call.1} parent=1 // pred_fallthru
      _
    // Predicated region
    $region38: #{tpu_custom_call.1} parent=1 // pred_check
      _
    $region39: #{tpu_custom_call.1} parent=1 // pred_check_branch
      %87 = sbr.rel (0) target = $region41
    $region40: #{tpu_custom_call.1} parent=1 // pred_region
      %88 = dma.done [#allocation3], 256
    $region41: #{tpu_custom_call.1} parent=1 // pred_fallthru
      _
    // Predicated region
    $region42: #{tpu_custom_call.1} parent=1 // pred_check
      _
    $region43: #{tpu_custom_call.1} parent=1 // pred_check_branch
      %90 = sbr.rel (0) target = $region45
    $region44: #{tpu_custom_call.1} parent=1 // pred_region
      %91 = dma.done [#allocation6], 256
    $region45: #{tpu_custom_call.1} parent=1 // pred_fallthru
      _
    // Predicated region
    $region46: #{tpu_custom_call.1} parent=1 // pred_check
      _
    $region47: #{tpu_custom_call.1} parent=1 // pred_check_branch
      %93 = sbr.rel (0) target = $region49
    $region48: #{tpu_custom_call.1} parent=1 // pred_region
      %94 = dma.done [#allocation6], 512
    $region49: #{tpu_custom_call.1} parent=1 // pred_fallthru
      _
    // Predicated region
    $region50: #{tpu_custom_call.1} parent=1 // pred_check
      _
    $region51: #{tpu_custom_call.1} parent=1 // pred_check_branch
      %96 = sbr.rel (0) target = $region53
    $region52: #{tpu_custom_call.1} parent=1 // pred_region
      %97 = dma.done [#allocation9], 512
    $region53: #{tpu_custom_call.1} parent=1 // pred_fallthru
      _
    // Predicated region
    $region54: #{tpu_custom_call.1} parent=1 // pred_check
      _
    $region55: #{tpu_custom_call.1} parent=1 // pred_check_branch
      %99 = sbr.rel (0) target = $region57
    $region56: #{tpu_custom_call.1} parent=1 // pred_region
      %100 = dma.done [#allocation9], 512
    $region57: #{tpu_custom_call.1} parent=1 // pred_fallthru
      _
    %v101 = vld [vmem:[#allocation2] sm:$0xff]
    %v102 = vld [vmem:[#allocation2 + $0x8] sm:$0xff]
    %v103 = vld [vmem:[#allocation5] sm:$0xff]
    %v104 = vld [vmem:[#allocation5 + $0x8] sm:$0xff]
    %v105 = vld [vmem:[%s2] sm:$0x1]
    %v107 = vlaneseq
    %v108 = vshrl.u32 %v107, 7
    %v109 = vsub.s32 0, %v108
    %v110 = vrot.slane %v105, %v109
    %vm112 = vcmask 130048
    %v114 = vsel %vm112, %v101, 0
    %v117 = vsel %vm112, %v102, 0
    %119 = vmatprep.subr.mxu0 0.0
    %120 = vmatpush1.msra.mxu0 %v103
    %121 = vmatprep.subr.mxu0 0.0
    %122 = vmatpush1.msra.mxu0 %v104
    %123 = vmatprep.subr.mxu0 0.0
    %124 = vmatpush1.msra.mxu0 0.0
    %125 = vmatprep.subr.mxu0 0.0
    %126 = vmatpush1.msra.mxu0 0.0
    %127 = vmatprep.subr.mxu0 0.0
    %128 = vmatpush1.msra.mxu0 0.0
    %129 = vmatprep.subr.mxu0 0.0
    %130 = vmatpush1.msra.mxu0 0.0
    %131 = vmatprep.subr.mxu0 0.0
    %132 = vmatpush1.msra.mxu0 0.0
    %133 = vmatprep.subr.mxu0 0.0
    %134 = vmatpush1.msra.mxu0 0.0
    %135 = vmatprep.subr.mxu0 0.0
    %136 = vmatpush1.msra.mxu0 0.0
    %137 = vmatprep.subr.mxu0 0.0
    %138 = vmatpush1.msra.mxu0 0.0
    %139 = vmatprep.subr.mxu0 0.0
    %140 = vmatpush1.msra.mxu0 0.0
    %141 = vmatprep.subr.mxu0 0.0
    %142 = vmatpush1.msra.mxu0 0.0
    %143 = vmatprep.subr.mxu0 0.0
    %144 = vmatpush1.msra.mxu0 0.0
    %145 = vmatprep.subr.mxu0 0.0
    %146 = vmatpush1.msra.mxu0 0.0
    %147 = vmatprep.subr.mxu0 0.0
    %148 = vmatpush1.msra.mxu0 0.0
    %149 = vmatprep.subr.mxu0 0.0
    %150 = vmatpush1.msra.mxu0 0.0
    %151 = vmatprep.subr.mxu0 0.0
    %152 = vmatpush1.msra.mxu0 0.0
    %153 = vmatprep.subr.mxu0 0.0
    %154 = vmatpush1.msra.mxu0 0.0
    %155 = vmatprep.subr.mxu0 0.0
    %156 = vmatpush1.msra.mxu0 0.0
    %157 = vmatprep.subr.mxu0 0.0
    %158 = vmatpush1.msra.mxu0 0.0
    %159 = vmatprep.subr.mxu0 0.0
    %160 = vmatpush1.msra.mxu0 0.0
    %161 = vmatprep.subr.mxu0 0.0
    %162 = vmatpush1.msra.mxu0 0.0
    %163 = vmatprep.subr.mxu0 0.0
    %164 = vmatpush1.msra.mxu0 0.0
    %165 = vmatprep.subr.mxu0 0.0
    %166 = vmatpush1.msra.mxu0 0.0
    %167 = vmatprep.subr.mxu0 0.0
    %168 = vmatpush1.msra.mxu0 0.0
    %169 = vmatprep.subr.mxu0 0.0
    %170 = vmatpush1.msra.mxu0 0.0
    %171 = vmatprep.subr.mxu0 0.0
    %172 = vmatpush1.msra.mxu0 0.0
    %173 = vmatprep.subr.mxu0 0.0
    %174 = vmatpush1.msra.mxu0 0.0
    %175 = vmatprep.subr.mxu0 0.0
    %176 = vmatpush1.msra.mxu0 0.0
    %177 = vmatprep.subr.mxu0 0.0
    %178 = vmatpush1.msra.mxu0 0.0
    %179 = vmatprep.subr.mxu0 0.0
    %180 = vmatpush1.msra.mxu0 0.0
    %181 = vmatprep.subr.mxu0 0.0
    %182 = vmatpush1.msra.mxu0 0.0
    %183 = vmatprep.mubr.f32.mxu0 0.0
    %184 = vmatmul.mubr.f32.gmra.mrb[0].mxu0 %v114
    %v185 = vpop.f32.mrb[0].mxu0
    %v186 = vadd.f32 %v110, %v185
    %v187 = vpop.f32.mrb[0].mxu0
    %188 = vmatprep.mubr.f32.mxu0 0.0
    %189 = vmatmul.mubr.f32.gmra.mrb[0].mxu0 %v117
    %v190 = vpop.f32.mrb[0].mxu0
    %v191 = vadd.f32 %v110, %v190
    %v192 = vpop.f32.mrb[0].mxu0
    %193 = vdwg.mxu0
    %vm194 = vcmp.gt.f32.partialorder %v186, 0.0
    %vm195 = vcmp.gt.f32.partialorder %v191, 0.0
    %vm196 = vweird.f32 %v186
    %vm197 = vweird.f32 %v191
    %vm198 = vmxor %vm196, 1
    %vm199 = vmxor %vm197, 1
    %vm200 = vmand %vm194, %vm198
    %vm201 = vmand %vm195, %vm199
    %v202 = vsel %vm200, 1, 0
    %v203 = vsel %vm201, 1, 0
    %v204 = vcvt.s32.f32 %v202
    %v205 = vcvt.s32.f32 %v203
    %v206 = vmax.f32 %v186, 0.0
    %v207 = vmax.f32 %v191, 0.0
    %v208 = vld [vmem:[#allocation7] sm:$0xff]
    %v209 = vld [vmem:[#allocation7 + $0x8] sm:$0xff]
    %v210 = vld [vmem:[#allocation7 + $0x10] sm:$0xff]
    %v211 = vld [vmem:[#allocation7 + $0x18] sm:$0xff]
    %v212 = vld [vmem:[%s4] sm:$0x1]
    %v214 = vlaneseq
    %v215 = vshrl.u32 %v214, 7
    %v216 = vsub.s32 0, %v215
    %v217 = vrot.slane %v212, %v216
    %vm219 = vcmask 261120
    %v221 = vsel %vm219, %v206, 0
    %v224 = vsel %vm219, %v207, 0
    %226 = vmatprep.subr.mxu0 0.0
    %227 = vmatpush1.msra.mxu0 %v208
    %228 = vmatprep.subr.mxu0 0.0
    %229 = vmatpush1.msra.mxu0 %v209
    %230 = vmatprep.subr.mxu0 0.0
    %231 = vmatpush1.msra.mxu0 %v210
    %232 = vmatprep.subr.mxu0 0.0
    %233 = vmatpush1.msra.mxu0 %v211
    %234 = vmatprep.subr.mxu0 0.0
    %235 = vmatpush1.msra.mxu0 0.0
    %236 = vmatprep.subr.mxu0 0.0
    %237 = vmatpush1.msra.mxu0 0.0
    %238 = vmatprep.subr.mxu0 0.0
    %239 = vmatpush1.msra.mxu0 0.0
    %240 = vmatprep.subr.mxu0 0.0
    %241 = vmatpush1.msra.mxu0 0.0
    %242 = vmatprep.subr.mxu0 0.0
    %243 = vmatpush1.msra.mxu0 0.0
    %244 = vmatprep.subr.mxu0 0.0
    %245 = vmatpush1.msra.mxu0 0.0
    %246 = vmatprep.subr.mxu0 0.0
    %247 = vmatpush1.msra.mxu0 0.0
    %248 = vmatprep.subr.mxu0 0.0
    %249 = vmatpush1.msra.mxu0 0.0
    %250 = vmatprep.subr.mxu0 0.0
    %251 = vmatpush1.msra.mxu0 0.0
    %252 = vmatprep.subr.mxu0 0.0
    %253 = vmatpush1.msra.mxu0 0.0
    %254 = vmatprep.subr.mxu0 0.0
    %255 = vmatpush1.msra.mxu0 0.0
    %256 = vmatprep.subr.mxu0 0.0
    %257 = vmatpush1.msra.mxu0 0.0
    %258 = vmatprep.subr.mxu0 0.0
    %259 = vmatpush1.msra.mxu0 0.0
    %260 = vmatprep.subr.mxu0 0.0
    %261 = vmatpush1.msra.mxu0 0.0
    %262 = vmatprep.subr.mxu0 0.0
    %263 = vmatpush1.msra.mxu0 0.0
    %264 = vmatprep.subr.mxu0 0.0
    %265 = vmatpush1.msra.mxu0 0.0
    %266 = vmatprep.subr.mxu0 0.0
    %267 = vmatpush1.msra.mxu0 0.0
    %268 = vmatprep.subr.mxu0 0.0
    %269 = vmatpush1.msra.mxu0 0.0
    %270 = vmatprep.subr.mxu0 0.0
    %271 = vmatpush1.msra.mxu0 0.0
    %272 = vmatprep.subr.mxu0 0.0
    %273 = vmatpush1.msra.mxu0 0.0
    %274 = vmatprep.subr.mxu0 0.0
    %275 = vmatpush1.msra.mxu0 0.0
    %276 = vmatprep.subr.mxu0 0.0
    %277 = vmatpush1.msra.mxu0 0.0
    %278 = vmatprep.subr.mxu0 0.0
    %279 = vmatpush1.msra.mxu0 0.0
    %280 = vmatprep.subr.mxu0 0.0
    %281 = vmatpush1.msra.mxu0 0.0
    %282 = vmatprep.subr.mxu0 0.0
    %283 = vmatpush1.msra.mxu0 0.0
    %284 = vmatprep.subr.mxu0 0.0
    %285 = vmatpush1.msra.mxu0 0.0
    %286 = vmatprep.subr.mxu0 0.0
    %287 = vmatpush1.msra.mxu0 0.0
    %288 = vmatprep.subr.mxu0 0.0
    %289 = vmatpush1.msra.mxu0 0.0
    %290 = vmatprep.mubr.f32.mxu0 0.0
    %291 = vmatmul.mubr.f32.gmra.mrb[0].mxu0 %v221
    %v292 = vpop.f32.mrb[0].mxu0
    %v293 = vadd.f32 %v217, %v292
    %v294 = vpop.f32.mrb[0].mxu0
    %295 = vmatprep.mubr.f32.mxu0 0.0
    %296 = vmatmul.mubr.f32.gmra.mrb[0].mxu0 %v224
    %v297 = vpop.f32.mrb[0].mxu0
    %v298 = vadd.f32 %v217, %v297
    %v299 = vpop.f32.mrb[0].mxu0
    %300 = vdwg.mxu0
    %vm301 = vcmp.gt.f32.partialorder %v293, 0.0
    %vm302 = vcmp.gt.f32.partialorder %v298, 0.0
    %vm303 = vweird.f32 %v293
    %vm304 = vweird.f32 %v298
    %vm305 = vmxor %vm303, 1
    %vm306 = vmxor %vm304, 1
    %vm307 = vmand %vm301, %vm305
    %vm308 = vmand %vm302, %vm306
    %v309 = vsel %vm307, 1, 0
    %v310 = vsel %vm308, 1, 0
    %v311 = vcvt.s32.f32 %v309
    %v312 = vcvt.s32.f32 %v310
    %v313 = vmax.f32 %v293, 0.0
    %v314 = vmax.f32 %v298, 0.0
    %v315 = vld [vmem:[#allocation8] sm:$0xff]
    %v316 = vld [vmem:[#allocation8 + $0x8] sm:$0xff]
    %v317 = vld [vmem:[#allocation8 + $0x10] sm:$0xff]
    %v318 = vld [vmem:[#allocation8 + $0x18] sm:$0xff]
    %v319 = vld [vmem:[%s6] sm:$0x1]
    %v321 = vlaneseq
    %v322 = vshrl.u32 %v321, 7
    %v323 = vsub.s32 0, %v322
    %v324 = vrot.slane %v319, %v323
    %v327 = vsel %vm219, %v313, 0
    %v330 = vsel %vm219, %v314, 0
    %332 = vmatprep.subr.mxu0 0.0
    %333 = vmatpush1.msra.mxu0 %v315
    %334 = vmatprep.subr.mxu0 0.0
    %335 = vmatpush1.msra.mxu0 %v316
    %336 = vmatprep.subr.mxu0 0.0
    %337 = vmatpush1.msra.mxu0 %v317
    %338 = vmatprep.subr.mxu0 0.0
    %339 = vmatpush1.msra.mxu0 %v318
    %340 = vmatprep.subr.mxu0 0.0
    %341 = vmatpush1.msra.mxu0 0.0
    %342 = vmatprep.subr.mxu0 0.0
    %343 = vmatpush1.msra.mxu0 0.0
    %344 = vmatprep.subr.mxu0 0.0
    %345 = vmatpush1.msra.mxu0 0.0
    %346 = vmatprep.subr.mxu0 0.0
    %347 = vmatpush1.msra.mxu0 0.0
    %348 = vmatprep.subr.mxu0 0.0
    %349 = vmatpush1.msra.mxu0 0.0
    %350 = vmatprep.subr.mxu0 0.0
    %351 = vmatpush1.msra.mxu0 0.0
    %352 = vmatprep.subr.mxu0 0.0
    %353 = vmatpush1.msra.mxu0 0.0
    %354 = vmatprep.subr.mxu0 0.0
    %355 = vmatpush1.msra.mxu0 0.0
    %356 = vmatprep.subr.mxu0 0.0
    %357 = vmatpush1.msra.mxu0 0.0
    %358 = vmatprep.subr.mxu0 0.0
    %359 = vmatpush1.msra.mxu0 0.0
    %360 = vmatprep.subr.mxu0 0.0
    %361 = vmatpush1.msra.mxu0 0.0
    %362 = vmatprep.subr.mxu0 0.0
    %363 = vmatpush1.msra.mxu0 0.0
    %364 = vmatprep.subr.mxu0 0.0
    %365 = vmatpush1.msra.mxu0 0.0
    %366 = vmatprep.subr.mxu0 0.0
    %367 = vmatpush1.msra.mxu0 0.0
    %368 = vmatprep.subr.mxu0 0.0
    %369 = vmatpush1.msra.mxu0 0.0
    %370 = vmatprep.subr.mxu0 0.0
    %371 = vmatpush1.msra.mxu0 0.0
    %372 = vmatprep.subr.mxu0 0.0
    %373 = vmatpush1.msra.mxu0 0.0
    %374 = vmatprep.subr.mxu0 0.0
    %375 = vmatpush1.msra.mxu0 0.0
    %376 = vmatprep.subr.mxu0 0.0
    %377 = vmatpush1.msra.mxu0 0.0
    %378 = vmatprep.subr.mxu0 0.0
    %379 = vmatpush1.msra.mxu0 0.0
    %380 = vmatprep.subr.mxu0 0.0
    %381 = vmatpush1.msra.mxu0 0.0
    %382 = vmatprep.subr.mxu0 0.0
    %383 = vmatpush1.msra.mxu0 0.0
    %384 = vmatprep.subr.mxu0 0.0
    %385 = vmatpush1.msra.mxu0 0.0
    %386 = vmatprep.subr.mxu0 0.0
    %387 = vmatpush1.msra.mxu0 0.0
    %388 = vmatprep.subr.mxu0 0.0
    %389 = vmatpush1.msra.mxu0 0.0
    %390 = vmatprep.subr.mxu0 0.0
    %391 = vmatpush1.msra.mxu0 0.0
    %392 = vmatprep.subr.mxu0 0.0
    %393 = vmatpush1.msra.mxu0 0.0
    %394 = vmatprep.subr.mxu0 0.0
    %395 = vmatpush1.msra.mxu0 0.0
    %396 = vmatprep.mubr.f32.mxu0 0.0
    %397 = vmatmul.mubr.f32.gmra.mrb[0].mxu0 %v327
    %v398 = vpop.f32.mrb[0].mxu0
    %v399 = vadd.f32 %v324, %v398
    %v400 = vpop.f32.mrb[0].mxu0
    %401 = vmatprep.mubr.f32.mxu0 0.0
    %402 = vmatmul.mubr.f32.gmra.mrb[0].mxu0 %v330
    %v403 = vpop.f32.mrb[0].mxu0
    %v404 = vadd.f32 %v324, %v403
    %v405 = vpop.f32.mrb[0].mxu0
    %406 = vdwg.mxu0
    %vm407 = vcmp.gt.f32.partialorder %v399, 0.0
    %vm408 = vcmp.gt.f32.partialorder %v404, 0.0
    %vm409 = vweird.f32 %v399
    %vm410 = vweird.f32 %v404
    %vm411 = vmxor %vm409, 1
    %vm412 = vmxor %vm410, 1
    %vm413 = vmand %vm407, %vm411
    %vm414 = vmand %vm408, %vm412
    %v415 = vsel %vm413, 1, 0
    %v416 = vsel %vm414, 1, 0
    %v417 = vcvt.s32.f32 %v415
    %v418 = vcvt.s32.f32 %v416
    %v419 = vmax.f32 %v399, 0.0
    %v420 = vmax.f32 %v404, 0.0
    %v421 = vld [vmem:[#allocation10] sm:$0xff]
    %v422 = vld [vmem:[#allocation10 + $0x8] sm:$0xff]
    %v423 = vld [vmem:[#allocation10 + $0x10] sm:$0xff]
    %v424 = vld [vmem:[#allocation10 + $0x18] sm:$0xff]
    %v425 = vld [vmem:[%s8] sm:$0x1]
    %v427 = vlaneseq
    %v428 = vshrl.u32 %v427, 7
    %v429 = vsub.s32 0, %v428
    %v430 = vrot.slane %v425, %v429
    %v433 = vsel %vm219, %v419, 0
    %v436 = vsel %vm219, %v420, 0
    %438 = vmatprep.subr.mxu0 0.0
    %439 = vmatpush1.msra.mxu0 %v421
    %440 = vmatprep.subr.mxu0 0.0
    %441 = vmatpush1.msra.mxu0 %v422
    %442 = vmatprep.subr.mxu0 0.0
    %443 = vmatpush1.msra.mxu0 %v423
    %444 = vmatprep.subr.mxu0 0.0
    %445 = vmatpush1.msra.mxu0 %v424
    %446 = vmatprep.subr.mxu0 0.0
    %447 = vmatpush1.msra.mxu0 0.0
    %448 = vmatprep.subr.mxu0 0.0
    %449 = vmatpush1.msra.mxu0 0.0
    %450 = vmatprep.subr.mxu0 0.0
    %451 = vmatpush1.msra.mxu0 0.0
    %452 = vmatprep.subr.mxu0 0.0
    %453 = vmatpush1.msra.mxu0 0.0
    %454 = vmatprep.subr.mxu0 0.0
    %455 = vmatpush1.msra.mxu0 0.0
    %456 = vmatprep.subr.mxu0 0.0
    %457 = vmatpush1.msra.mxu0 0.0
    %458 = vmatprep.subr.mxu0 0.0
    %459 = vmatpush1.msra.mxu0 0.0
    %460 = vmatprep.subr.mxu0 0.0
    %461 = vmatpush1.msra.mxu0 0.0
    %462 = vmatprep.subr.mxu0 0.0
    %463 = vmatpush1.msra.mxu0 0.0
    %464 = vmatprep.subr.mxu0 0.0
    %465 = vmatpush1.msra.mxu0 0.0
    %466 = vmatprep.subr.mxu0 0.0
    %467 = vmatpush1.msra.mxu0 0.0
    %468 = vmatprep.subr.mxu0 0.0
    %469 = vmatpush1.msra.mxu0 0.0
    %470 = vmatprep.subr.mxu0 0.0
    %471 = vmatpush1.msra.mxu0 0.0
    %472 = vmatprep.subr.mxu0 0.0
    %473 = vmatpush1.msra.mxu0 0.0
    %474 = vmatprep.subr.mxu0 0.0
    %475 = vmatpush1.msra.mxu0 0.0
    %476 = vmatprep.subr.mxu0 0.0
    %477 = vmatpush1.msra.mxu0 0.0
    %478 = vmatprep.subr.mxu0 0.0
    %479 = vmatpush1.msra.mxu0 0.0
    %480 = vmatprep.subr.mxu0 0.0
    %481 = vmatpush1.msra.mxu0 0.0
    %482 = vmatprep.subr.mxu0 0.0
    %483 = vmatpush1.msra.mxu0 0.0
    %484 = vmatprep.subr.mxu0 0.0
    %485 = vmatpush1.msra.mxu0 0.0
    %486 = vmatprep.subr.mxu0 0.0
    %487 = vmatpush1.msra.mxu0 0.0
    %488 = vmatprep.subr.mxu0 0.0
    %489 = vmatpush1.msra.mxu0 0.0
    %490 = vmatprep.subr.mxu0 0.0
    %491 = vmatpush1.msra.mxu0 0.0
    %492 = vmatprep.subr.mxu0 0.0
    %493 = vmatpush1.msra.mxu0 0.0
    %494 = vmatprep.subr.mxu0 0.0
    %495 = vmatpush1.msra.mxu0 0.0
    %496 = vmatprep.subr.mxu0 0.0
    %497 = vmatpush1.msra.mxu0 0.0
    %498 = vmatprep.subr.mxu0 0.0
    %499 = vmatpush1.msra.mxu0 0.0
    %500 = vmatprep.subr.mxu0 0.0
    %501 = vmatpush1.msra.mxu0 0.0
    %502 = vmatprep.mubr.f32.mxu0 0.0
    %503 = vmatmul.mubr.f32.gmra.mrb[0].mxu0 %v433
    %v504 = vpop.f32.mrb[0].mxu0
    %v505 = vadd.f32 %v430, %v504
    %v506 = vpop.f32.mrb[0].mxu0
    %507 = vmatprep.mubr.f32.mxu0 0.0
    %508 = vmatmul.mubr.f32.gmra.mrb[0].mxu0 %v436
    %v509 = vpop.f32.mrb[0].mxu0
    %v510 = vadd.f32 %v430, %v509
    %v511 = vpop.f32.mrb[0].mxu0
    %512 = vdwg.mxu0
    %vm513 = vcmp.ne.f32.partialorder %v505, 0.0
    %vm514 = vcmp.ne.f32.partialorder %v510, 0.0
    %vm515 = vweird.f32 %v505
    %vm516 = vweird.f32 %v510
    %vm517 = vmxor %vm515, 1
    %vm518 = vmxor %vm516, 1
    %vm519 = vmand %vm513, %vm517
    %vm520 = vmand %vm514, %vm518
    %v521 = vsel %vm519, 1, 0
    %v522 = vsel %vm520, 1, 0
    %v523 = vcvt.s32.f32 %v521
    %v524 = vcvt.s32.f32 %v522
    %527 = vrot.lane.b32.xlu0 %v204, 32
    %v528 = vpop.permute.xlu0 %527
    %529 = vrot.lane.b32.xlu0 %v205, 32
    %v530 = vpop.permute.xlu0 %529
    %535 = vrot.lane.b32.xlu0 %v311, 64
    %v536 = vpop.permute.xlu0 %535
    %537 = vrot.lane.b32.xlu0 %v312, 64
    %v538 = vpop.permute.xlu0 %537
    %543 = vrot.lane.b32.xlu0 %v417, 96
    %v544 = vpop.permute.xlu0 %543
    %545 = vrot.lane.b32.xlu0 %v418, 96
    %v546 = vpop.permute.xlu0 %545
    %v549 = vsel %vm219, %v505, %v528
    %v550 = vsel %vm219, %v510, %v530
    %vm551 = vcmask 523264
    %v552 = vsel %vm551, %v549, %v536
    %v553 = vsel %vm551, %v550, %v538
    %vm554 = vcmask 785408
    %v555 = vsel %vm554, %v552, %v544
    %v556 = vsel %vm554, %v553, %v546
    %557 = vst [vmem:[#allocation11] sm:$0xff] %v555
    %558 = vst.msk [vmem:[#allocation11 + $0x8] sm:$0xff] %vm219, %v523
    %559 = vst [vmem:[#allocation11 + $0x10] sm:$0xff] %v556
    %560 = vst.msk [vmem:[#allocation11 + $0x18] sm:$0xff] %vm219, %v524
    // Predicated region
    $region58: #{tpu_custom_call.1} parent=1 // pred_check
      _
    $region59: #{tpu_custom_call.1} parent=1 // pred_check_branch
      %562 = sbr.rel (0) target = $region61
    $region60: #{tpu_custom_call.1} parent=1 // pred_region
      %s564 = ssub.s32 512, 512
      %565 = vsyncadd [#allocation4], %s564
      %s566 = sshll.u32 [#allocation11], 4
      %s567 = int_to_ptr.vmem [resolvable:$true] %s566
      %572 = dma.vmem_to_hbm [thread:$0]  %s567, 512, %s9, [#allocation4], 256, 256, 16
    $region61: #{tpu_custom_call.1} parent=1 // pred_fallthru
      _
    // Predicated region
    $region62: #{tpu_custom_call.1} parent=1 // pred_check
      _
    $region63: #{tpu_custom_call.1} parent=1 // pred_check_branch
      %574 = sbr.rel (0) target = $region65
    $region64: #{tpu_custom_call.1} parent=1 // pred_region
      %575 = dma.done [#allocation4], 512
    $region65: #{tpu_custom_call.1} parent=1 // pred_fallthru
      _
    %576 = vsyncpa [#allocation3], 1
    %577 = vsyncpa [#allocation6], 1
    %578 = vsyncpa [#allocation9], 1
    %579 = vsyncpa [#allocation4], 1

</llo_original>
